<compile_context>
chip_gen: v7x
topology: tpu7x:2x2x1
jax: 0.10.0
libtpu: 0.0.40
codegen_flags: <defaults>
</compile_context>

<pallas_src>
import jax
import jax.numpy as jnp
from jax.experimental import pallas as pl
from jax.experimental.pallas import tpu as pltpu

LANE = 128


def _hw_config(in_dtype):
    """Generation-aware (compute_dtype, target_block_bytes, vmem_limit_bytes)."""
    vmem_cap = 64 << 20          # conservative default == v7x per-TC physical VMEM
    kind = ""
    try:
        vmem_cap = int(pltpu.get_tpu_info().vmem_capacity_bytes)
    except Exception:
        pass
    try:
        kind = jax.devices()[0].device_kind.lower()
    except Exception:
        pass
    # v5-and-older TensorCores lack bf16 VPU/EUP -> keep f32 compute there.
    old_gen = any(tag in kind for tag in ("v2", "v3", "v4", "v5"))

    if vmem_cap >= (96 << 20):   # v5e / v6e: 128 MiB physical VMEM per TC
        target_block = 8 << 20   # in+out double-buffered -> ~32 MiB resident
        vmem_limit = 48 << 20    # above v5e's 16 MiB default scoped limit
    else:                        # v7x: 64 MiB physical per TC
        target_block = 6 << 20   # ~24 MiB resident, headroom under 64 MiB
        vmem_limit = 40 << 20

    if in_dtype == jnp.bfloat16 and not old_gen:
        compute_dtype = jnp.bfloat16   # keep EUP/VPU in bf16 on v6e / v7x
    else:
        compute_dtype = jnp.float32
    return compute_dtype, target_block, vmem_limit


def _row_tile(m, width, itemsize, target_block_bytes):
    """Row tile (multiple of 8, or full extent) targeting target_block_bytes."""
    row_bytes = max(1, width * itemsize)
    target_rows = max(8, (target_block_bytes // row_bytes) // 8 * 8)
    if m >= 16:
        # Keep >= 2-4 grid steps so input/output double-buffering actually
        # overlaps DMA with compute and both v7x TCs get row tiles.
        target_rows = min(target_rows, max(8, (m // 4) // 8 * 8))
    if target_rows >= m:
        return m                  # single full-extent block (tiny input)
    return target_rows            # multiple of 8; ragged last block is masked


def _make_kernel(compute_dtype):
    def kernel(sp_ref, x_ref, o_ref):
        # sp_ref: (1,) f32 SMEM scalar-prefetch ref holding softplus(beta).
        x = x_ref[...].astype(compute_dtype)
        sp = sp_ref[0].astype(compute_dtype)
        half = jnp.asarray(0.5, compute_dtype)
        one = jnp.asarray(1.0, compute_dtype)
        # sigmoid(z) = 0.5 * tanh(0.5 * z) + 0.5  ->  one EUP op per element.
        sig = half * (jnp.tanh((x * sp) * half) + one)
        o_ref[...] = (x * sig).astype(o_ref.dtype)
    return kernel


def swish_pallas(x, beta):
    """Swish with scalar (dim=1) beta: x * sigmoid(x * softplus(beta))."""
    orig_shape = x.shape
    orig_dtype = x.dtype
    n = x.size
    if n == 0:
        return x

    # softplus(beta) once, in f32, in the wrapper -> SMEM scalar prefetch arg.
    # TODO(synk): only the module's default dim=1 (scalar beta) case is handled.
    sp = jnp.logaddexp(beta.astype(jnp.float32).reshape(-1)[:1], jnp.float32(0.0))

    itemsize = jnp.dtype(orig_dtype).itemsize
    compute_dtype, target_block, vmem_limit = _hw_config(orig_dtype)

    if n % LANE == 0:
        # Lane-dense slab: widest multiple of 128 dividing n (free reshape).
        width = next(w for w in (2048, 1024, 512, 256, 128) if n % w == 0)
        m = n // width
    else:
        # Ragged element count: keep the natural trailing dim as the lane axis.
        # No pad / post-slice -> zero extra HBM round trips; tail lanes are
        # simply masked stores.
        # TODO(synk): extremely wide ragged rows (>> block budget) are not re-tiled.
        width = orig_shape[-1] if x.ndim >= 2 else n
        m = n // width
    x2 = x.reshape(m, width)          # free (contiguous) reshape

    tm = _row_tile(m, width, itemsize, target_block)
    grid = (pl.cdiv(m, tm),)          # non-divisible m -> Pallas masks edge block

    out = pl.pallas_call(
        _make_kernel(compute_dtype),
        out_shape=jax.ShapeDtypeStruct((m, width), orig_dtype),
        grid_spec=pltpu.PrefetchScalarGridSpec(
            num_scalar_prefetch=1,            # softplus(beta) -> SMEM
            grid=grid,
            in_specs=[pl.BlockSpec((tm, width), lambda i, _sp: (i, 0))],
            out_specs=pl.BlockSpec((tm, width), lambda i, _sp: (i, 0)),
        ),
        compiler_params=pltpu.CompilerParams(
            dimension_semantics=("parallel",),   # shard row tiles across TCs
            vmem_limit_bytes=vmem_limit,
        ),
    )(sp, x2)

    return out.reshape(orig_shape)


def swish_ref(x, beta):
    sp = jnp.logaddexp(beta.reshape(-1)[0].astype(jnp.float32), jnp.float32(0.0))
    xf = x.astype(jnp.float32)
    return xf * jax.nn.sigmoid(xf * sp)


if __name__ == "__main__":
    key = jax.random.PRNGKey(0)

    # Parameter init matching nn.Parameter(torch.tensor([0.5] * dim)), dim=1
    beta = jnp.full((1,), 0.5, dtype=jnp.float32)

    # 1) Small NCHW-style f32 input (lane-dense fast path, single block).
    x = jax.random.normal(key, (2, 4, 16, 16), dtype=jnp.float32)
    y = jax.block_until_ready(swish_pallas(x, beta))
    assert y.shape == x.shape and y.dtype == x.dtype
    assert jnp.allclose(y.astype(jnp.float32), swish_ref(x, beta), atol=1e-5, rtol=1e-5)

    # 2) Ragged element count (3*5*7 = 105): no pad / slice, natural lane axis.
    x2 = jax.random.normal(jax.random.PRNGKey(1), (3, 5, 7), dtype=jnp.float32)
    y2 = jax.block_until_ready(swish_pallas(x2, beta))
    assert y2.shape == x2.shape
    assert jnp.allclose(y2.astype(jnp.float32), swish_ref(x2, beta), atol=1e-5, rtol=1e-5)

    # 3) Multi-block grid with a ragged row edge (m=20 rows, tm=8 -> masked tail).
    x3 = jax.random.normal(jax.random.PRNGKey(2), (10, 64, 64), dtype=jnp.float32)
    y3 = jax.block_until_ready(swish_pallas(x3, beta))
    assert jnp.allclose(y3.astype(jnp.float32), swish_ref(x3, beta), atol=1e-5, rtol=1e-5)

    # 4) bf16 input (bf16 compute path on v6e/v7x, f32 elsewhere).
    x4 = jax.random.normal(jax.random.PRNGKey(3), (2, 8, 128), dtype=jnp.bfloat16)
    y4 = jax.block_until_ready(swish_pallas(x4, beta))
    assert y4.dtype == jnp.bfloat16
    assert jnp.allclose(y4.astype(jnp.float32), swish_ref(x4, beta), atol=5e-2, rtol=5e-2)

    print("KERNEL_OK")
</pallas_src>

<mosaic_0001>
module attributes {stable_mosaic.version = 11 : i64} {
  func.func @kernel(%arg0: i32, %arg1: memref<1xf32, #tpu.memory_space<smem>>, %arg2: memref<1x2048xf32, #tpu.memory_space<vmem>>, %arg3: memref<1x2048xf32, #tpu.memory_space<vmem>>) attributes {dimension_semantics = [#tpu.dimension_semantics<parallel>], iteration_bounds = array<i64: 1>, scalar_prefetch = 1 : i64, scratch_operands = 0 : i64, tpu.core_type = #tpu.core_type<tc>, window_params = [{transform_indices = @transform_0, window_bounds = array<i64: 1, 2048>}, {transform_indices = @transform_1, window_bounds = array<i64: 1, 2048>}]} {
    %c0 = arith.constant 0 : index
    %c0_0 = arith.constant 0 : index
    %0 = vector.load %arg2[%c0, %c0_0] : memref<1x2048xf32, #tpu.memory_space<vmem>>, vector<1x2048xf32>
    %c0_1 = arith.constant 0 : index
    %1 = memref.load %arg1[%c0_1] : memref<1xf32, #tpu.memory_space<smem>>
    %2 = vector.broadcast %1 : f32 to vector<1x2048xf32>
    %3 = arith.mulf %0, %2 : vector<1x2048xf32>
    %cst = arith.constant 5.000000e-01 : f32
    %4 = vector.broadcast %cst : f32 to vector<1x2048xf32>
    %5 = arith.mulf %3, %4 : vector<1x2048xf32>
    %6 = math.tanh %5 : vector<1x2048xf32>
    %cst_2 = arith.constant 1.000000e+00 : f32
    %7 = vector.broadcast %cst_2 : f32 to vector<1x2048xf32>
    %8 = arith.addf %6, %7 : vector<1x2048xf32>
    %cst_3 = arith.constant 5.000000e-01 : f32
    %9 = vector.broadcast %cst_3 : f32 to vector<1x2048xf32>
    %10 = arith.mulf %9, %8 : vector<1x2048xf32>
    %11 = arith.mulf %0, %10 : vector<1x2048xf32>
    %c0_4 = arith.constant 0 : index
    %c0_5 = arith.constant 0 : index
    %12 = vector.load %arg3[%c0_4, %c0_5] : memref<1x2048xf32, #tpu.memory_space<vmem>>, vector<1x2048xf32>
    tpu.vector_store %arg3[%c0_4, %c0_5], %11 {strides = array<i32>} : memref<1x2048xf32, #tpu.memory_space<vmem>>, vector<1x2048xf32>,
    return
  }
  func.func @transform_0(%arg0: i32, %arg1: memref<1xf32, #tpu.memory_space<smem>>) -> (i32, i32) {
    %c0_i32 = arith.constant 0 : i32
    %c0_i32_0 = arith.constant 0 : i32
    return %arg0, %c0_i32 : i32, i32
  }
  func.func @transform_1(%arg0: i32, %arg1: memref<1xf32, #tpu.memory_space<smem>>) -> (i32, i32) {
    %c0_i32 = arith.constant 0 : i32
    %c0_i32_0 = arith.constant 0 : i32
    return %arg0, %c0_i32 : i32, i32
  }
}

</mosaic_0001>

<llo_original>
// kernel: tpu_custom_call.1
$region0: #{tpu_custom_call.1}
  #allocation0 [shape = 'u32[]', space=smem, size = 0x4, offset = 0x4, fixed_abs, tag = 'smem constant byte address 0x4 - core index']
  #allocation1 [shape = 'u32[144,128]{1,0:T(1,128)}', space=vmem, size = 0x12000, scoped, tag = 'internal scratch']
  #allocation2 [shape = 's32[1]{0}', space=sflag, size = 0x4, scoped, tag = 'scoped memory for tpu_custom_call.1']
  #allocation3 [shape = 'f32[1]{0:T(128)S(6)}', space=smem, size = 0x200, scoped, tag = 'prefetched SMEM operand 0']
  %s0 = inlined_call_operand.<no memory space> [shape: f32[1], index: 0, kind: input, shape index: {}]
  %s1 = inlined_call_operand.hbm [shape: f32[1,2048], index: 1, kind: input, shape index: {}]
  %s2 = inlined_call_operand.hbm [shape: f32[1,2048], index: 2, kind: output, shape index: {}]
  %s3 = sld [smem:[#allocation0]]
  $region18: #{tpu_custom_call.1} parent=0
    _
  %s5 = ssub.s32 1, %s3
  %s6 = scalar_select 0, %s5, %s3
  %7 = sst [smem:[#allocation3]] %s0
  $region1: #{tpu_custom_call.1} parent=0
    #allocation4 [shape = 'u8[8192]{0}', space=vmem, size = 0x2000, scoped, tag = 'input window, operand 1, single buffered']
    #allocation5 [shape = 's32[1]{0}', space=sflag, size = 0x4, scoped, tag = 'scoped memory for tpu_custom_call.1']
    #allocation6 [shape = 's32[1]{0}', space=sflag, size = 0x4, scoped, tag = 'scoped memory for tpu_custom_call.1']
    #allocation7 [shape = 'u8[8192]{0}', space=vmem, size = 0x2000, scoped, tag = 'output window, operand 0, single buffered']
    %8 = vsyncpa [#allocation5], 0
    %9 = vsyncpa [#allocation6], 0
    // Predicated region
    $region2: #{tpu_custom_call.1} parent=1 // pred_check
      _
    $region3: #{tpu_custom_call.1} parent=1 // pred_check_branch
      %11 = sbr.rel (0) target = $region5
    $region4: #{tpu_custom_call.1} parent=1 // pred_region
      %s13 = ssub.s32 256, 256
      %14 = vsyncadd [#allocation5], %s13
      %s16 = sshll.u32 [#allocation4], 4
      %s17 = int_to_ptr.vmem [resolvable:$true] %s16
      %19 = dma.hbm_to_vmem [thread:$0]  %s1, 256, %s17, [#allocation5]
    $region5: #{tpu_custom_call.1} parent=1 // pred_fallthru
      _
    // Predicated region
    $region6: #{tpu_custom_call.1} parent=1 // pred_check
      _
    $region7: #{tpu_custom_call.1} parent=1 // pred_check_branch
      %21 = sbr.rel (0) target = $region9
    $region8: #{tpu_custom_call.1} parent=1 // pred_region
      %22 = dma.done [#allocation5], 256
    $region9: #{tpu_custom_call.1} parent=1 // pred_fallthru
      _
    %v23 = vld [vmem:[#allocation4] sm:$0xff]
    %v24 = vld [vmem:[#allocation4 + $0x8] sm:$0xff]
    %s25 = sld [smem:[#allocation3]]
    %v26 = vstv %s25
    %v27 = vmul.f32 %v23, %v26
    %v28 = vmul.f32 %v24, %v26
    %v29 = vmul.f32 %v27, 0.5
    %v30 = vmul.f32 %v28, 0.5
    %v31 = vtanh.pop %v29
    %v32 = vtanh.pop %v30
    %v33 = vadd.f32 %v31, 1.0
    %v34 = vadd.f32 %v32, 1.0
    %v35 = vmul.f32 %v33, 0.5
    %v36 = vmul.f32 %v34, 0.5
    %v37 = vmul.f32 %v23, %v35
    %v38 = vmul.f32 %v24, %v36
    %39 = vst [vmem:[#allocation7] sm:$0xff] %v37
    %40 = vst [vmem:[#allocation7 + $0x8] sm:$0xff] %v38
    // Predicated region
    $region10: #{tpu_custom_call.1} parent=1 // pred_check
      _
    $region11: #{tpu_custom_call.1} parent=1 // pred_check_branch
      %42 = sbr.rel (0) target = $region13
    $region12: #{tpu_custom_call.1} parent=1 // pred_region
      %s44 = ssub.s32 256, 256
      %45 = vsyncadd [#allocation6], %s44
      %s47 = sshll.u32 [#allocation7], 4
      %s48 = int_to_ptr.vmem [resolvable:$true] %s47
      %50 = dma.vmem_to_hbm [thread:$0]  %s48, 256, %s2, [#allocation6]
    $region13: #{tpu_custom_call.1} parent=1 // pred_fallthru
      _
    // Predicated region
    $region14: #{tpu_custom_call.1} parent=1 // pred_check
      _
    $region15: #{tpu_custom_call.1} parent=1 // pred_check_branch
      %52 = sbr.rel (0) target = $region17
    $region16: #{tpu_custom_call.1} parent=1 // pred_region
      %53 = dma.done [#allocation6], 256
    $region17: #{tpu_custom_call.1} parent=1 // pred_fallthru
      _
    %54 = vsyncpa [#allocation5], 1
    %55 = vsyncpa [#allocation6], 1

</llo_original>
